<compile_context>
chip_gen: v5e
topology: v5e:2x2
jax: 0.10.0
libtpu: 0.0.40
codegen_flags: <defaults>
</compile_context>

<pallas_src>
import functools

import jax
import jax.numpy as jnp
from jax.experimental import pallas as pl
from jax.experimental.pallas import tpu as pltpu


def _round_up(x, m):
    return ((x + m - 1) // m) * m


def _cdiv(a, b):
    return (a + b - 1) // b


# ---------------------------------------------------------------------------
# Kernel: online-softmax cross entropy with label smoothing.
# grid = (batch_blocks, class_blocks); the class axis is the reduction and is
# last / "arbitrary"; per-row state lives in VMEM scratch.
# ---------------------------------------------------------------------------
def _ce_kernel(logits_ref, target_ref, loss_ref, m_sc, l_sc, sel_sc, sum_sc, *,
               n_classes, block_classes, label_smoothing, mask_classes):
    k = pl.program_id(1)

    @pl.when(k == 0)
    def _():
        m_sc[...] = jnp.full_like(m_sc, -jnp.inf)
        l_sc[...] = jnp.zeros_like(l_sc)
        sel_sc[...] = jnp.zeros_like(sel_sc)
        sum_sc[...] = jnp.zeros_like(sum_sc)

    x = logits_ref[...].astype(jnp.float32)                      # (tb, tc)
    col = k * block_classes + jax.lax.broadcasted_iota(jnp.int32, x.shape, 1)

    # Columns past n_classes only exist when the class tiling overshoots C
    # (partial tail block); mask them so garbage never reaches a row
    # reduction.  For the common single-class-block path this is compiled out.
    if mask_classes:
        x_red = jnp.where(col < n_classes, x, -jnp.inf)
    else:
        x_red = x

    # Online logsumexp update.
    m_prev = m_sc[...]
    m_new = jnp.maximum(m_prev, jnp.max(x_red, axis=1, keepdims=True))
    alpha = jnp.exp(m_prev - m_new)
    l_sc[...] = alpha * l_sc[...] + jnp.sum(jnp.exp(x_red - m_new), axis=1,
                                            keepdims=True)
    m_sc[...] = m_new

    # class_select(logits, target): one-hot via iota == target.  target < C,
    # so masked tail columns can never match; no extra mask needed.
    tgt = target_ref[...]                                        # (tb, 1) int32
    sel_sc[...] += jnp.sum(jnp.where(col == tgt, x, 0.0), axis=1, keepdims=True)

    if label_smoothing != 0.0:
        xs = jnp.where(col < n_classes, x, 0.0) if mask_classes else x
        sum_sc[...] += jnp.sum(xs, axis=1, keepdims=True)

    @pl.when(k == pl.num_programs(1) - 1)
    def _():
        lse = m_sc[...] + jnp.log(l_sc[...])
        loss = lse - (1.0 - label_smoothing) * sel_sc[...]
        if label_smoothing != 0.0:
            loss = loss - label_smoothing * (1.0 / n_classes) * sum_sc[...]
        loss_ref[...] = loss.astype(loss_ref.dtype)


# ---------------------------------------------------------------------------
# Tiling heuristic + wrapper
# ---------------------------------------------------------------------------

_TILE_F32_BYTES = 4 * 1024 * 1024   # target f32 working-tile bytes per block


def _choose_tiling(B, C):
    B8 = _round_up(B, 8)
    # Rows per block if the full class extent fits in the tile budget.
    tb_full = (_TILE_F32_BYTES // (C * 4)) // 8 * 8
    if tb_full >= 8:
        tb = min(1024, B8, tb_full)
    else:
        tb = min(B8, 128)                      # class-streaming path
    # Keep >= 2 batch blocks when the batch allows it so the "parallel" batch
    # axis can shard rows across both v7x TensorCores.
    if B8 >= 16:
        tb = min(tb, max(8, (B8 // 2) // 8 * 8))
    tb = max(8, tb)
    if tb_full >= 8:
        tc = C                                 # single class block, no masking
    else:
        tc = max(128, (_TILE_F32_BYTES // (tb * 4)) // 128 * 128)
        tc = min(tc, _round_up(C, 128))
    nk = _cdiv(C, tc)
    return tb, tc, nk


def cross_entropy_per_example(logits, target, label_smoothing=0.0,
                              tile_override=None):
    """Unweighted per-example cross entropy, shape (B,), float32."""
    B, C = logits.shape
    if tile_override is None:
        tb, tc, nk = _choose_tiling(B, C)
    else:
        tb, tc = tile_override
        nk = _cdiv(C, tc)
    nb = _cdiv(B, tb)
    mask_classes = (tc * nk != C)

    tgt = target.reshape(-1).astype(jnp.int32).reshape(B, 1)

    kernel = functools.partial(
        _ce_kernel,
        n_classes=C,
        block_classes=tc,
        label_smoothing=float(label_smoothing),
        mask_classes=mask_classes,
    )

    out = pl.pallas_call(
        kernel,
        out_shape=jax.ShapeDtypeStruct((B, 1), jnp.float32),
        grid=(nb, nk),
        in_specs=[
            pl.BlockSpec((tb, tc), lambda i, k: (i, k)),   # logits, native dtype
            pl.BlockSpec((tb, 1), lambda i, k: (i, 0)),    # target
        ],
        out_specs=pl.BlockSpec((tb, 1), lambda i, k: (i, 0)),
        scratch_shapes=[pltpu.VMEM((tb, 1), jnp.float32)] * 4,
        compiler_params=pltpu.CompilerParams(
            dimension_semantics=("parallel", "arbitrary"),
            vmem_limit_bytes=48 * 1024 * 1024,
        ),
    )(logits, tgt)

    return out[:, 0]


@functools.partial(jax.jit, static_argnames=("aggregate", "label_smoothing"))
def cross_entropy_loss(logits, target, weights=None, aggregate="mean",
                       label_smoothing=0.0):
    """Equivalent of CrossEntropyLoss(aggregate, label_smoothing)(logits, target, weights)."""
    assert aggregate in ("sum", "mean", None)
    ce = cross_entropy_per_example(logits, target, label_smoothing)
    if weights is not None:
        # Trivial (B,)-sized elementwise op; cheaper than streaming a
        # lane-padded (tb,1) weights block through the kernel each grid step.
        ce = ce * weights.reshape(ce.shape).astype(ce.dtype)
    if aggregate == "sum":
        return jnp.sum(ce)
    if aggregate == "mean":
        return jnp.mean(ce)
    return ce


# ---------------------------------------------------------------------------
# main
# ---------------------------------------------------------------------------

if __name__ == "__main__":
    key = jax.random.PRNGKey(0)
    k1, k2, k3, k4, k5 = jax.random.split(key, 5)

    def ref_per_example(lg, tg, w, ls):
        lg = lg.astype(jnp.float32)
        lse = jax.scipy.special.logsumexp(lg, axis=1)
        sel = lg[jnp.arange(lg.shape[0]), tg]
        out = lse - (1.0 - ls) * sel - ls * jnp.mean(lg, axis=1)
        if w is not None:
            out = out * w
        return out

    # ---- Test 1: default tiling (single class block, partial batch block) ----
    batch, num_classes = 6, 10
    logits = jax.random.normal(k1, (batch, num_classes), jnp.float32)
    target = jax.random.randint(k2, (batch,), 0, num_classes, jnp.int32)
    weights = 0.5 + jax.random.uniform(k3, (batch,), jnp.float32)

    loss_mean = cross_entropy_loss(logits, target, weights,
                                   aggregate="mean", label_smoothing=0.1)
    loss_vec = cross_entropy_loss(logits, target, None,
                                  aggregate=None, label_smoothing=0.0)
    loss_sum = cross_entropy_loss(logits, target, None,
                                  aggregate="sum", label_smoothing=0.0)
    loss_mean, loss_vec, loss_sum = jax.block_until_ready(
        (loss_mean, loss_vec, loss_sum))

    ref_mean = jnp.mean(ref_per_example(logits, target, weights, 0.1))
    ref_vec = ref_per_example(logits, target, None, 0.0)

    assert loss_mean.shape == (), loss_mean.shape
    assert loss_vec.shape == (batch,), loss_vec.shape
    assert jnp.allclose(loss_mean, ref_mean, rtol=1e-5, atol=1e-5), (loss_mean, ref_mean)
    assert jnp.allclose(loss_vec, ref_vec, rtol=1e-5, atol=1e-5), (loss_vec, ref_vec)
    assert jnp.allclose(loss_sum, jnp.sum(ref_vec), rtol=1e-5, atol=1e-5), (loss_sum,)

    # ---- Test 2: force the class-streaming (online logsumexp) path at a small
    # shape by overriding the tile sizes: tb=8, tc=128 -> 3 class blocks with a
    # masked partial tail block and 2 batch blocks.
    b2, c2 = 16, 300
    logits2 = jax.random.normal(k4, (b2, c2), jnp.float32)
    target2 = jax.random.randint(k5, (b2,), 0, c2, jnp.int32)
    vec2 = cross_entropy_per_example(logits2, target2, 0.1, tile_override=(8, 128))
    vec2 = jax.block_until_ready(vec2)
    ref2 = ref_per_example(logits2, target2, None, 0.1)
    assert vec2.shape == (b2,), vec2.shape
    assert jnp.allclose(vec2, ref2, rtol=1e-5, atol=2e-5), (vec2, ref2)

    print("KERNEL_OK")
</pallas_src>

<mosaic_0001>
module attributes {stable_mosaic.version = 11 : i64} {
  func.func @_ce_kernel(%arg0: i32, %arg1: i32, %arg2: memref<8x10xf32, #tpu.memory_space<vmem>>, %arg3: memref<8x1xi32, #tpu.memory_space<vmem>>, %arg4: memref<8x1xf32, #tpu.memory_space<vmem>>, %arg5: memref<8x1xf32, #tpu.memory_space<vmem>>, %arg6: memref<8x1xf32, #tpu.memory_space<vmem>>, %arg7: memref<8x1xf32, #tpu.memory_space<vmem>>, %arg8: memref<8x1xf32, #tpu.memory_space<vmem>>) attributes {dimension_semantics = [#tpu.dimension_semantics<parallel>, #tpu.dimension_semantics<arbitrary>], iteration_bounds = array<i64: 1, 1>, scalar_prefetch = 0 : i64, scratch_operands = 4 : i64, tpu.core_type = #tpu.core_type<tc>, window_params = [{transform_indices = @transform_0, window_bounds = array<i64: 8, 10>}, {transform_indices = @transform_1, window_bounds = array<i64: 8, 1>}, {transform_indices = @transform_2, window_bounds = array<i64: 8, 1>}]} {
    %c0_i32 = arith.constant 0 : i32
    %0 = arith.cmpi eq, %arg1, %c0_i32 : i32
    %1 = arith.extui %0 : i1 to i32
    %c0_i32_0 = arith.constant 0 : i32
    %2 = arith.cmpi ne, %1, %c0_i32_0 : i32
    scf.if %2 {
      %cst_26 = arith.constant 0xFF800000 : f32
      %42 = vector.broadcast %cst_26 : f32 to vector<8x1xf32>
      %c0_27 = arith.constant 0 : index
      %c0_28 = arith.constant 0 : index
      %43 = vector.load %arg5[%c0_27, %c0_28] : memref<8x1xf32, #tpu.memory_space<vmem>>, vector<8x1xf32>
      tpu.vector_store %arg5[%c0_27, %c0_28], %42 {strides = array<i32>} : memref<8x1xf32, #tpu.memory_space<vmem>>, vector<8x1xf32>,
      %cst_29 = arith.constant 0.000000e+00 : f32
      %44 = vector.broadcast %cst_29 : f32 to vector<8x1xf32>
      %c0_30 = arith.constant 0 : index
      %c0_31 = arith.constant 0 : index
      %45 = vector.load %arg6[%c0_30, %c0_31] : memref<8x1xf32, #tpu.memory_space<vmem>>, vector<8x1xf32>
      tpu.vector_store %arg6[%c0_30, %c0_31], %44 {strides = array<i32>} : memref<8x1xf32, #tpu.memory_space<vmem>>, vector<8x1xf32>,
      %cst_32 = arith.constant 0.000000e+00 : f32
      %46 = vector.broadcast %cst_32 : f32 to vector<8x1xf32>
      %c0_33 = arith.constant 0 : index
      %c0_34 = arith.constant 0 : index
      %47 = vector.load %arg7[%c0_33, %c0_34] : memref<8x1xf32, #tpu.memory_space<vmem>>, vector<8x1xf32>
      tpu.vector_store %arg7[%c0_33, %c0_34], %46 {strides = array<i32>} : memref<8x1xf32, #tpu.memory_space<vmem>>, vector<8x1xf32>,
      %cst_35 = arith.constant 0.000000e+00 : f32
      %48 = vector.broadcast %cst_35 : f32 to vector<8x1xf32>
      %c0_36 = arith.constant 0 : index
      %c0_37 = arith.constant 0 : index
      %49 = vector.load %arg8[%c0_36, %c0_37] : memref<8x1xf32, #tpu.memory_space<vmem>>, vector<8x1xf32>
      tpu.vector_store %arg8[%c0_36, %c0_37], %48 {strides = array<i32>} : memref<8x1xf32, #tpu.memory_space<vmem>>, vector<8x1xf32>,
    } else {
    }
    %c0 = arith.constant 0 : index
    %c0_1 = arith.constant 0 : index
    %3 = vector.load %arg2[%c0, %c0_1] : memref<8x10xf32, #tpu.memory_space<vmem>>, vector<8x10xf32>
    %c10_i32 = arith.constant 10 : i32
    %4 = arith.muli %arg1, %c10_i32 : i32
    %5 = tpu.iota {dimensions = array<i32: 1>} : vector<8x10xi32>
    %6 = vector.broadcast %4 : i32 to vector<8x10xi32>
    %7 = arith.addi %6, %5 : vector<8x10xi32>
    %c0_2 = arith.constant 0 : index
    %c0_3 = arith.constant 0 : index
    %8 = vector.load %arg5[%c0_2, %c0_3] : memref<8x1xf32, #tpu.memory_space<vmem>>, vector<8x1xf32>
    %cst = arith.constant dense<0xFF800000> : vector<8xf32>
    %9 = vector.multi_reduction <maximumf>, %3, %cst [1] : vector<8x10xf32> to vector<8xf32>
    %10 = vector.shape_cast %9 : vector<8xf32> to vector<8x1xf32>
    %11 = arith.maximumf %8, %10 : vector<8x1xf32>
    %12 = arith.subf %8, %11 : vector<8x1xf32>
    %13 = math.exp %12 : vector<8x1xf32>
    %c0_4 = arith.constant 0 : index
    %c0_5 = arith.constant 0 : index
    %14 = vector.load %arg6[%c0_4, %c0_5] : memref<8x1xf32, #tpu.memory_space<vmem>>, vector<8x1xf32>
    %15 = arith.mulf %13, %14 : vector<8x1xf32>
    %16 = vector.broadcast %11 : vector<8x1xf32> to vector<8x10xf32>
    %17 = arith.subf %3, %16 : vector<8x10xf32>
    %18 = math.exp %17 : vector<8x10xf32>
    %cst_6 = arith.constant dense<0.000000e+00> : vector<8xf32>
    %19 = vector.multi_reduction <add>, %18, %cst_6 [1] : vector<8x10xf32> to vector<8xf32>
    %20 = vector.shape_cast %19 : vector<8xf32> to vector<8x1xf32>
    %21 = arith.addf %15, %20 : vector<8x1xf32>
    %c0_7 = arith.constant 0 : index
    %c0_8 = arith.constant 0 : index
    %22 = vector.load %arg6[%c0_7, %c0_8] : memref<8x1xf32, #tpu.memory_space<vmem>>, vector<8x1xf32>
    tpu.vector_store %arg6[%c0_7, %c0_8], %21 {strides = array<i32>} : memref<8x1xf32, #tpu.memory_space<vmem>>, vector<8x1xf32>,
    %c0_9 = arith.constant 0 : index
    %c0_10 = arith.constant 0 : index
    %23 = vector.load %arg5[%c0_9, %c0_10] : memref<8x1xf32, #tpu.memory_space<vmem>>, vector<8x1xf32>
    tpu.vector_store %arg5[%c0_9, %c0_10], %11 {strides = array<i32>} : memref<8x1xf32, #tpu.memory_space<vmem>>, vector<8x1xf32>,
    %c0_11 = arith.constant 0 : index
    %c0_12 = arith.constant 0 : index
    %24 = vector.load %arg3[%c0_11, %c0_12] : memref<8x1xi32, #tpu.memory_space<vmem>>, vector<8x1xi32>
    %c0_13 = arith.constant 0 : index
    %c0_14 = arith.constant 0 : index
    %25 = vector.load %arg7[%c0_13, %c0_14] : memref<8x1xf32, #tpu.memory_space<vmem>>, vector<8x1xf32>
    %26 = vector.broadcast %24 : vector<8x1xi32> to vector<8x10xi32>
    %27 = arith.cmpi eq, %7, %26 : vector<8x10xi32>
    %cst_15 = arith.constant 0.000000e+00 : f32
    %28 = vector.broadcast %cst_15 : f32 to vector<8x10xf32>
    %29 = arith.select %27, %3, %28 : vector<8x10xi1>, vector<8x10xf32>
    %cst_16 = arith.constant dense<0.000000e+00> : vector<8xf32>
    %30 = vector.multi_reduction <add>, %29, %cst_16 [1] : vector<8x10xf32> to vector<8xf32>
    %31 = vector.shape_cast %30 : vector<8xf32> to vector<8x1xf32>
    %32 = arith.addf %25, %31 : vector<8x1xf32>
    %c0_17 = arith.constant 0 : index
    %c0_18 = arith.constant 0 : index
    %33 = vector.load %arg7[%c0_17, %c0_18] : memref<8x1xf32, #tpu.memory_space<vmem>>, vector<8x1xf32>
    tpu.vector_store %arg7[%c0_17, %c0_18], %32 {strides = array<i32>} : memref<8x1xf32, #tpu.memory_space<vmem>>, vector<8x1xf32>,
    %c0_19 = arith.constant 0 : index
    %c0_20 = arith.constant 0 : index
    %34 = vector.load %arg8[%c0_19, %c0_20] : memref<8x1xf32, #tpu.memory_space<vmem>>, vector<8x1xf32>
    %cst_21 = arith.constant dense<0.000000e+00> : vector<8xf32>
    %35 = vector.multi_reduction <add>, %3, %cst_21 [1] : vector<8x10xf32> to vector<8xf32>
    %36 = vector.shape_cast %35 : vector<8xf32> to vector<8x1xf32>
    %37 = arith.addf %34, %36 : vector<8x1xf32>
    %c0_22 = arith.constant 0 : index
    %c0_23 = arith.constant 0 : index
    %38 = vector.load %arg8[%c0_22, %c0_23] : memref<8x1xf32, #tpu.memory_space<vmem>>, vector<8x1xf32>
    tpu.vector_store %arg8[%c0_22, %c0_23], %37 {strides = array<i32>} : memref<8x1xf32, #tpu.memory_space<vmem>>, vector<8x1xf32>,
    %c0_i32_24 = arith.constant 0 : i32
    %39 = arith.cmpi eq, %arg1, %c0_i32_24 : i32
    %40 = arith.extui %39 : i1 to i32
    %c0_i32_25 = arith.constant 0 : i32
    %41 = arith.cmpi ne, %40, %c0_i32_25 : i32
    scf.if %41 {
      %c0_26 = arith.constant 0 : index
      %c0_27 = arith.constant 0 : index
      %42 = vector.load %arg5[%c0_26, %c0_27] : memref<8x1xf32, #tpu.memory_space<vmem>>, vector<8x1xf32>
      %c0_28 = arith.constant 0 : index
      %c0_29 = arith.constant 0 : index
      %43 = vector.load %arg6[%c0_28, %c0_29] : memref<8x1xf32, #tpu.memory_space<vmem>>, vector<8x1xf32>
      %44 = math.log %43 : vector<8x1xf32>
      %45 = arith.addf %42, %44 : vector<8x1xf32>
      %c0_30 = arith.constant 0 : index
      %c0_31 = arith.constant 0 : index
      %46 = vector.load %arg7[%c0_30, %c0_31] : memref<8x1xf32, #tpu.memory_space<vmem>>, vector<8x1xf32>
      %cst_32 = arith.constant 0.899999976 : f32
      %47 = vector.broadcast %cst_32 : f32 to vector<8x1xf32>
      %48 = arith.mulf %47, %46 : vector<8x1xf32>
      %49 = arith.subf %45, %48 : vector<8x1xf32>
      %c0_33 = arith.constant 0 : index
      %c0_34 = arith.constant 0 : index
      %50 = vector.load %arg8[%c0_33, %c0_34] : memref<8x1xf32, #tpu.memory_space<vmem>>, vector<8x1xf32>
      %cst_35 = arith.constant 0.00999999977 : f32
      %51 = vector.broadcast %cst_35 : f32 to vector<8x1xf32>
      %52 = arith.mulf %51, %50 : vector<8x1xf32>
      %53 = arith.subf %49, %52 : vector<8x1xf32>
      %c0_36 = arith.constant 0 : index
      %c0_37 = arith.constant 0 : index
      %54 = vector.load %arg4[%c0_36, %c0_37] : memref<8x1xf32, #tpu.memory_space<vmem>>, vector<8x1xf32>
      tpu.vector_store %arg4[%c0_36, %c0_37], %53 {strides = array<i32>} : memref<8x1xf32, #tpu.memory_space<vmem>>, vector<8x1xf32>,
    } else {
    }
    return
  }
  func.func @transform_0(%arg0: i32, %arg1: i32) -> (i32, i32) {
    %c0_i32 = arith.constant 0 : i32
    return %arg0, %arg1 : i32, i32
  }
  func.func @transform_1(%arg0: i32, %arg1: i32) -> (i32, i32) {
    %c0_i32 = arith.constant 0 : i32
    %c0_i32_0 = arith.constant 0 : i32
    return %arg0, %c0_i32 : i32, i32
  }
  func.func @transform_2(%arg0: i32, %arg1: i32) -> (i32, i32) {
    %c0_i32 = arith.constant 0 : i32
    %c0_i32_0 = arith.constant 0 : i32
    return %arg0, %c0_i32 : i32, i32
  }
}

</mosaic_0001>

<llo_original>
// kernel: cross_entropy_loss.1
$region0: #{cross_entropy_loss.1}
  #allocation0 [shape = 'u32[]', space=smem, size = 0x4, offset = 0x4, fixed_abs, tag = 'smem constant byte address 0x4 - core index']
  #allocation1 [shape = 'u32[72,128]{1,0:T(1,128)}', space=vmem, size = 0x9000, scoped, tag = 'internal scratch']
  #allocation2 [shape = 'f32[8,1]{1,0:T(8,128)}', space=vmem, size = 0x1000, scoped, tag = 'scratch operand']
  #allocation3 [shape = 'f32[8,1]{1,0:T(8,128)}', space=vmem, size = 0x1000, scoped, tag = 'scratch operand']
  #allocation4 [shape = 'f32[8,1]{1,0:T(8,128)}', space=vmem, size = 0x1000, scoped, tag = 'scratch operand']
  #allocation5 [shape = 'f32[8,1]{1,0:T(8,128)}', space=vmem, size = 0x1000, scoped, tag = 'scratch operand']
  %s0 = inlined_call_operand.vmem [shape: f32[6,10], index: 0, kind: input, shape index: {}]
  %s1 = inlined_call_operand.vmem [shape: s32[6,1], index: 1, kind: input, shape index: {}]
  %s2 = inlined_call_operand.vmem [shape: f32[6,1], index: 2, kind: output, shape index: {}]
  %s3 = sld [smem:[#allocation0]]
  $region26: #{cross_entropy_loss.1} parent=0
    _
  %s5 = ssub.s32 1, %s3
  %s6 = scalar_select 0, %s5, %s3
  // Predicated region
  $region2: #{cross_entropy_loss.1} parent=0 // pred_check
    _
  $region3: #{cross_entropy_loss.1} parent=0 // pred_check_branch
    %8 = sbr.rel (0) target = $region5
  $region4: #{cross_entropy_loss.1} parent=0 // pred_region
    _
  $region5: #{cross_entropy_loss.1} parent=0 // pred_fallthru
    _
  // Predicated region
  $region6: #{cross_entropy_loss.1} parent=0 // pred_check
    _
  $region7: #{cross_entropy_loss.1} parent=0 // pred_check_branch
    %10 = sbr.rel (0) target = $region9
  $region8: #{cross_entropy_loss.1} parent=0 // pred_region
    _
  $region9: #{cross_entropy_loss.1} parent=0 // pred_fallthru
    _
  %p11 = scmp.eq.s32.totalorder 0, 0
  // Predicated region
  $region10: #{cross_entropy_loss.1} parent=0 // pred_check
    %p12 = pneg %p11
  $region11: #{cross_entropy_loss.1} parent=0 // pred_check_branch
    %14 = sbr.rel (%p12) target = $region13
  $region12: #{cross_entropy_loss.1} parent=0 // pred_region
    %vm15 = vcmask 7168
    %16 = vst.msk [vmem:[#allocation2] sm:$0xff] %vm15, -inf
    %17 = vst.msk [vmem:[#allocation3] sm:$0xff] %vm15, 0.0
    %18 = vst.msk [vmem:[#allocation4] sm:$0xff] %vm15, 0.0
    %19 = vst.msk [vmem:[#allocation5] sm:$0xff] %vm15, 0.0
  $region13: #{cross_entropy_loss.1} parent=0 // pred_fallthru
    _
  %v20 = vld [vmem:[%s0] sm:$0xff]
  %s21 = smul.u32 0, 10
  %v22 = vlaneseq
  %v23 = vand.u32 %v22, 127
  %v24 = vstv %s21
  %v25 = vadd.s32 %v24, %v23
  %v26 = vld [vmem:[#allocation2] sm:$0xff]
  %vm27 = vcmask 80896
  %v28 = vsel %vm27, %v20, -inf
  %29 = vmax.xlane.f32.xlu0 %v28
  %v30 = vpop.xlane.xlu0 %29
  %v31 = vmax.f32 %v26, %v30
  %v32 = vsub.f32 %v26, %v31
  %v33 = vmul.f32 %v32, 1.442695
  %v34 = vpow.pop %v33
  %v35 = vld [vmem:[#allocation3] sm:$0xff]
  %v36 = vmul.f32 %v34, %v35
  %38 = vset.pattern.permute.xlu0 0
  %39 = vperm.xlu0 %38, %v31
  %v40 = vpop.permute.xlu0 %39
  %v42 = vsub.f32 %v20, %v40
  %v43 = vmul.f32 %v42, 1.442695
  %v44 = vpow.pop %v43
  %v45 = vsel %vm27, %v44, 0.0
  %46 = vadd.xlane.f32.xlu0 %v45
  %v47 = vpop.xlane.xlu0 %46
  %v48 = vadd.f32 %v36, %v47
  %vm49 = vcmask 7168
  %50 = vst.msk [vmem:[#allocation3] sm:$0xff] %vm49, %v48
  %51 = vst.msk [vmem:[#allocation2] sm:$0xff] %vm49, %v31
  %v52 = vld [vmem:[%s1] sm:$0xff]
  %v53 = vld [vmem:[#allocation4] sm:$0xff]
  %54 = vset.pattern.permute.xlu0 0
  %55 = vperm.xlu0 %54, %v52
  %v56 = vpop.permute.xlu0 %55
  %vm57 = vcmp.eq.s32.totalorder %v25, %v56
  %v58 = vsel %vm57, %v20, 0.0
  %v59 = vsel %vm27, %v58, 0.0
  %60 = vadd.xlane.f32.xlu0 %v59
  %v61 = vpop.xlane.xlu0 %60
  %v62 = vadd.f32 %v53, %v61
  %63 = vst.msk [vmem:[#allocation4] sm:$0xff] %vm49, %v62
  %v64 = vld [vmem:[#allocation5] sm:$0xff]
  %v65 = vsel %vm27, %v20, 0.0
  %66 = vadd.xlane.f32.xlu0 %v65
  %v67 = vpop.xlane.xlu0 %66
  %v68 = vadd.f32 %v64, %v67
  %69 = vst.msk [vmem:[#allocation5] sm:$0xff] %vm49, %v68
  // Predicated region
  $region14: #{cross_entropy_loss.1} parent=0 // pred_check
    %p70 = pneg %p11
  $region15: #{cross_entropy_loss.1} parent=0 // pred_check_branch
    %72 = sbr.rel (%p70) target = $region17
  $region16: #{cross_entropy_loss.1} parent=0 // pred_region
    %v73 = vld [vmem:[#allocation2] sm:$0xff]
    %v74 = vld [vmem:[#allocation3] sm:$0xff]
    %v75 = vlog2.pop %v74
    %v76 = vmul.f32 %v75, 0.6931472
    %v77 = vadd.f32 %v73, %v76
    %v78 = vld [vmem:[#allocation4] sm:$0xff]
    %v79 = vmul.f32 %v78, 0.9
    %v80 = vsub.f32 %v77, %v79
    %v81 = vld [vmem:[#allocation5] sm:$0xff]
    %v82 = vmul.f32 %v81, 0.01
    %v83 = vsub.f32 %v80, %v82
    %84 = vst.msk [vmem:[%s2] sm:$0xff] %vm49, %v83
  $region17: #{cross_entropy_loss.1} parent=0 // pred_fallthru
    _
  // Predicated region
  $region18: #{cross_entropy_loss.1} parent=0 // pred_check
    _
  $region19: #{cross_entropy_loss.1} parent=0 // pred_check_branch
    %86 = sbr.rel (0) target = $region21
  $region20: #{cross_entropy_loss.1} parent=0 // pred_region
    _
  $region21: #{cross_entropy_loss.1} parent=0 // pred_fallthru
    _
  // Predicated region
  $region22: #{cross_entropy_loss.1} parent=0 // pred_check
    _
  $region23: #{cross_entropy_loss.1} parent=0 // pred_check_branch
    %88 = sbr.rel (0) target = $region25
  $region24: #{cross_entropy_loss.1} parent=0 // pred_region
    _
  $region25: #{cross_entropy_loss.1} parent=0 // pred_fallthru
    _

</llo_original>
